<compile_context>
chip_gen: v7x
topology: tpu7x:2x2x1
jax: 0.10.0
libtpu: 0.0.40
codegen_flags: <defaults>
</compile_context>

<pallas_src>
import functools
import math

import jax
import jax.numpy as jnp
from jax import lax
from jax.experimental import pallas as pl
from jax.experimental.pallas import tpu as pltpu

_VMEM_LIMIT = 32 * 1024 * 1024  # scoped-VMEM cap that is safe on v5e/v6e/v7x


# ---------------------------------------------------------------------------
# Kernel A: stride-1 band, in-kernel tap accumulation (no im2col in HBM).
#   out[b] (C_out, M) = sum_dk W[dk] (C_out, C_in) @ x_flat[b][:, dk*T:dk*T+M]
# with M = F_out*T; for stride 1 each tap's window is a contiguous lane slice
# of the flattened padded band, so the reads are plain offset slices.
# ---------------------------------------------------------------------------
def _tap_acc_kernel(w_ref, b_ref, x_ref, o_ref, *, kernel, t_dim, m_cols):
    c_out = w_ref.shape[1]
    acc = jnp.zeros((c_out, m_cols), jnp.float32)
    for dk in range(kernel):  # small static K -> fully unrolled
        acc += jnp.dot(w_ref[dk],
                       x_ref[0, :, pl.ds(dk * t_dim, m_cols)],
                       preferred_element_type=jnp.float32)
    o_ref[0, :, :] = (acc + b_ref[...]).astype(o_ref.dtype)


def _conv_band_stride1(x_flat, w_taps, bias_col, *, kernel, t_dim, m_cols):
    B, c_in, lpt = x_flat.shape
    k, c_out, _ = w_taps.shape
    body = functools.partial(_tap_acc_kernel, kernel=kernel, t_dim=t_dim,
                             m_cols=m_cols)
    return pl.pallas_call(
        body,
        out_shape=jax.ShapeDtypeStruct((B, c_out, m_cols), x_flat.dtype),
        grid_spec=pltpu.PrefetchScalarGridSpec(
            num_scalar_prefetch=0,
            grid=(B,),
            in_specs=[
                pl.BlockSpec((k, c_out, c_in), lambda b: (0, 0, 0)),  # weights (resident)
                pl.BlockSpec((c_out, 1), lambda b: (0, 0)),           # bias (resident)
                pl.BlockSpec((1, c_in, lpt), lambda b: (b, 0, 0)),    # band slab of batch b
            ],
            out_specs=pl.BlockSpec((1, c_out, m_cols), lambda b: (b, 0, 0)),
        ),
        compiler_params=pltpu.CompilerParams(
            dimension_semantics=("parallel",),
            vmem_limit_bytes=_VMEM_LIMIT,
        ),
    )(w_taps, bias_col, x_flat)


# ---------------------------------------------------------------------------
# Kernel B: strided bands (stride == kernel in SCNet), one matmul per batch:
#   out[b] (C_out, M) = W_flat (C_out, C_in*K) @ patches[b] (C_in*K, M) + bias
# ---------------------------------------------------------------------------
def _patch_matmul_kernel(w_ref, b_ref, p_ref, o_ref):
    acc = jnp.dot(w_ref[...], p_ref[0], preferred_element_type=jnp.float32)
    o_ref[0, :, :] = (acc + b_ref[...]).astype(o_ref.dtype)


def _conv_band_strided(patches, w_flat, bias_col):
    B, kd, m_cols = patches.shape
    c_out = w_flat.shape[0]
    return pl.pallas_call(
        _patch_matmul_kernel,
        out_shape=jax.ShapeDtypeStruct((B, c_out, m_cols), patches.dtype),
        grid_spec=pltpu.PrefetchScalarGridSpec(
            num_scalar_prefetch=0,
            grid=(B,),
            in_specs=[
                pl.BlockSpec((c_out, kd), lambda b: (0, 0)),          # weights (resident)
                pl.BlockSpec((c_out, 1), lambda b: (0, 0)),           # bias (resident)
                pl.BlockSpec((1, kd, m_cols), lambda b: (b, 0, 0)),   # patch slab of batch b
            ],
            out_specs=pl.BlockSpec((1, c_out, m_cols), lambda b: (b, 0, 0)),
        ),
        compiler_params=pltpu.CompilerParams(
            dimension_semantics=("parallel",),
            vmem_limit_bytes=_VMEM_LIMIT,
        ),
    )(w_flat, bias_col, patches)


def _band_patches(padded, kernel, stride):
    """(B, C, Lp, T) -> (B, C*kernel, F_out*T); rows (ci, dk), cols (f, t).

    For stride == kernel the taps are disjoint, so this is a single reorder
    pass over the padded band with no data duplication (fused with the pad
    under jit).
    """
    B, C, Lp, T = padded.shape
    f_out = (Lp - kernel) // stride + 1
    taps = []
    for dk in range(kernel):
        lim = dk + (f_out - 1) * stride + 1
        taps.append(lax.slice(padded, (0, 0, dk, 0), (B, C, lim, T),
                              (1, 1, stride, 1)))          # (B, C, F_out, T)
    p = jnp.stack(taps, axis=2)                             # (B, C, K, F_out, T)
    return p.reshape(B, C * kernel, f_out * T), f_out


class SDLayerPallas:
    """JAX/Pallas port of scnet.SCNet.SDlayer."""

    def __init__(self, channels_in, channels_out, band_configs, key):
        self.channels_in = channels_in
        self.channels_out = channels_out
        self.SR_low = band_configs['low']['SR']
        self.SR_mid = band_configs['mid']['SR']
        self.strides, self.kernels = [], []
        self.weights, self.biases = [], []
        for cfg in band_configs.values():
            key, wk, bk = jax.random.split(key, 3)
            k = cfg['kernel']
            fan_in = channels_in * k * 1
            bound = 1.0 / math.sqrt(fan_in)                 # nn.Conv2d default init
            w = jax.random.uniform(wk, (channels_out, channels_in, k, 1),
                                   jnp.float32, -bound, bound)
            b = jax.random.uniform(bk, (channels_out,), jnp.float32,
                                   -bound, bound)
            self.weights.append(w)
            self.biases.append(b)
            self.strides.append(cfg['stride'])
            self.kernels.append(k)
        # Single jitted forward: pad / reorder / reshape glue fuses around the
        # per-band pallas_calls on the XLA side.
        self._forward = jax.jit(self._forward_impl)

    # ---- shared band geometry (static Python ints) -------------------------
    def _splits(self, Fr):
        return [
            (0, math.ceil(Fr * self.SR_low)),
            (math.ceil(Fr * self.SR_low),
             math.ceil(Fr * (self.SR_low + self.SR_mid))),
            (math.ceil(Fr * (self.SR_low + self.SR_mid)), Fr),
        ]

    # ---- jitted forward -----------------------------------------------------
    def _forward_impl(self, x, weights, biases):
        B, C, Fr, T = x.shape
        outputs = []
        for w, b, stride, kernel, (start, end) in zip(
                weights, biases, self.strides, self.kernels, self._splits(Fr)):
            extracted = x[:, :, start:end, :]
            L = end - start
            if stride == 1:
                total_padding = kernel - stride
            else:
                total_padding = (stride - L % stride) % stride
            pad_left = total_padding // 2
            pad_right = total_padding - pad_left
            padded = jnp.pad(extracted,
                             ((0, 0), (0, 0), (pad_left, pad_right), (0, 0)))
            Lp = L + total_padding
            f_out = (Lp - kernel) // stride + 1
            m_cols = f_out * T
            bias_col = b.reshape(-1, 1)

            if stride == 1:
                # Contiguous-tap trick: stride 1 => tap dk over all (f, t)
                # columns is the lane range [dk*T, dk*T + m_cols) of the flat
                # padded band -> zero extra HBM traffic for the gather.
                assert Lp * T == (kernel - 1) * T + m_cols
                x_flat = padded.reshape(B, C, Lp * T)
                w_taps = jnp.transpose(w[:, :, :, 0], (2, 0, 1))  # (K, C_out, C_in)
                out_flat = _conv_band_stride1(x_flat, w_taps, bias_col,
                                              kernel=kernel, t_dim=T,
                                              m_cols=m_cols)
            else:
                patches, f_out2 = _band_patches(padded, kernel, stride)
                assert f_out2 == f_out
                # W_flat[co, ci*K + dk] = w[co, ci, dk, 0]  (matches row order)
                w_flat = w[:, :, :, 0].reshape(self.channels_out,
                                               self.channels_in * kernel)
                out_flat = _conv_band_strided(patches, w_flat, bias_col)

            # Columns are already ordered m = f*T + t per batch -> NCHW reshape
            # is free; no post-kernel transpose.
            outputs.append(out_flat.reshape(B, self.channels_out, f_out, T))
        return tuple(outputs)

    def __call__(self, x):
        B, C, Fr, T = x.shape
        original_lengths = [end - start for (start, end) in self._splits(Fr)]
        outputs = self._forward(x, tuple(self.weights), tuple(self.biases))
        return list(outputs), original_lengths

    # ---- pure-JAX reference (lax conv), same semantics as PyTorch ----------
    def reference(self, x):
        B, C, Fr, T = x.shape
        outputs, original_lengths = [], []
        for w, b, stride, kernel, (start, end) in zip(
                self.weights, self.biases, self.strides, self.kernels,
                self._splits(Fr)):
            extracted = x[:, :, start:end, :]
            L = end - start
            original_lengths.append(L)
            if stride == 1:
                total_padding = kernel - stride
            else:
                total_padding = (stride - L % stride) % stride
            pad_left = total_padding // 2
            pad_right = total_padding - pad_left
            padded = jnp.pad(extracted,
                             ((0, 0), (0, 0), (pad_left, pad_right), (0, 0)))
            out = lax.conv_general_dilated(
                padded, w, window_strides=(stride, 1), padding='VALID',
                dimension_numbers=('NCHW', 'OIHW', 'NCHW'))
            outputs.append(out + b[None, :, None, None])
        return outputs, original_lengths


if __name__ == "__main__":
    key = jax.random.PRNGKey(0)
    kx, kp = jax.random.split(key)

    # SCNet-style band configuration (stride/kernel along the frequency axis).
    band_configs = {
        'low':  {'SR': 0.175, 'stride': 1,  'kernel': 3},
        'mid':  {'SR': 0.392, 'stride': 4,  'kernel': 4},
        'high': {'SR': 0.433, 'stride': 16, 'kernel': 16},
    }

    B, C_in, C_out, Fr, T = 2, 4, 8, 16, 16
    x = jax.random.normal(kx, (B, C_in, Fr, T), jnp.float32)

    layer = SDLayerPallas(C_in, C_out, band_configs, kp)

    outputs, lengths = layer(x)
    outputs = [jax.block_until_ready(o) for o in outputs]

    ref_outputs, ref_lengths = layer.reference(x)
    assert lengths == ref_lengths, (lengths, ref_lengths)
    for o, r in zip(outputs, ref_outputs):
        assert o.shape == r.shape, (o.shape, r.shape)
        assert jnp.allclose(o, r, atol=5e-5, rtol=5e-5), \
            float(jnp.max(jnp.abs(o - r)))

    print("KERNEL_OK")
</pallas_src>

<mosaic_0001>
module attributes {stable_mosaic.version = 11 : i64} {
  func.func @_patch_matmul_kernel(%arg0: i32, %arg1: memref<8x64xf32, #tpu.memory_space<vmem>>, %arg2: memref<8x1xf32, #tpu.memory_space<vmem>>, %arg3: memref<1x64x16xf32, #tpu.memory_space<vmem>>, %arg4: memref<1x8x16xf32, #tpu.memory_space<vmem>>) attributes {dimension_semantics = [#tpu.dimension_semantics<parallel>], iteration_bounds = array<i64: 2>, scalar_prefetch = 0 : i64, scratch_operands = 0 : i64, tpu.core_type = #tpu.core_type<tc>, window_params = [{pipeline_mode = #tpu.pipeline_mode<synchronous>, transform_indices = @transform_0, window_bounds = array<i64: 8, 64>}, {pipeline_mode = #tpu.pipeline_mode<synchronous>, transform_indices = @transform_1, window_bounds = array<i64: 8, 1>}, {transform_indices = @transform_2, window_bounds = array<i64: 1, 64, 16>}, {transform_indices = @transform_3, window_bounds = array<i64: 1, 8, 16>}]} {
    %c0 = arith.constant 0 : index
    %c0_0 = arith.constant 0 : index
    %0 = vector.load %arg1[%c0, %c0_0] : memref<8x64xf32, #tpu.memory_space<vmem>>, vector<8x64xf32>
    %c0_1 = arith.constant 0 : index
    %c0_2 = arith.constant 0 : index
    %c0_3 = arith.constant 0 : index
    %1 = vector.load %arg3[%c0_1, %c0_2, %c0_3] : memref<1x64x16xf32, #tpu.memory_space<vmem>>, vector<1x64x16xf32>
    %2 = vector.shape_cast %1 : vector<1x64x16xf32> to vector<64x16xf32>
    %cst = arith.constant dense<0.000000e+00> : vector<8x16xf32>
    %3 = tpu.matmul %0, %2, %cst {dimension_numbers = #tpu.dot_dimension_numbers<[1], [0], [0], [1], [0, 0, 1, 1], [], []>} : vector<8x64xf32>, vector<64x16xf32>, vector<8x16xf32> -> vector<8x16xf32>
    %c0_4 = arith.constant 0 : index
    %c0_5 = arith.constant 0 : index
    %4 = vector.load %arg2[%c0_4, %c0_5] : memref<8x1xf32, #tpu.memory_space<vmem>>, vector<8x1xf32>
    %5 = vector.broadcast %4 : vector<8x1xf32> to vector<8x16xf32>
    %6 = arith.addf %3, %5 : vector<8x16xf32>
    %c0_6 = arith.constant 0 : index
    %c0_7 = arith.constant 0 : index
    %c0_8 = arith.constant 0 : index
    %7 = vector.load %arg4[%c0_6, %c0_7, %c0_8] : memref<1x8x16xf32, #tpu.memory_space<vmem>>, vector<1x8x16xf32>
    %8 = vector.shape_cast %7 : vector<1x8x16xf32> to vector<8x16xf32>
    %9 = vector.shape_cast %6 : vector<8x16xf32> to vector<1x8x16xf32>
    tpu.vector_store %arg4[%c0_6, %c0_7, %c0_8], %9 {strides = array<i32>} : memref<1x8x16xf32, #tpu.memory_space<vmem>>, vector<1x8x16xf32>,
    return
  }
  func.func @transform_0(%arg0: i32) -> (i32, i32) {
    %c0_i32 = arith.constant 0 : i32
    %c0_i32_0 = arith.constant 0 : i32
    %c0_i32_1 = arith.constant 0 : i32
    return %c0_i32, %c0_i32_0 : i32, i32
  }
  func.func @transform_1(%arg0: i32) -> (i32, i32) {
    %c0_i32 = arith.constant 0 : i32
    %c0_i32_0 = arith.constant 0 : i32
    %c0_i32_1 = arith.constant 0 : i32
    return %c0_i32, %c0_i32_0 : i32, i32
  }
  func.func @transform_2(%arg0: i32) -> (i32, i32, i32) {
    %c0_i32 = arith.constant 0 : i32
    %c0_i32_0 = arith.constant 0 : i32
    %c0_i32_1 = arith.constant 0 : i32
    return %arg0, %c0_i32, %c0_i32_0 : i32, i32, i32
  }
  func.func @transform_3(%arg0: i32) -> (i32, i32, i32) {
    %c0_i32 = arith.constant 0 : i32
    %c0_i32_0 = arith.constant 0 : i32
    %c0_i32_1 = arith.constant 0 : i32
    return %arg0, %c0_i32, %c0_i32_0 : i32, i32, i32
  }
}

module attributes {stable_mosaic.version = 11 : i64} {
  func.func @_patch_matmul_kernel(%arg0: i32, %arg1: memref<8x16xf32, #tpu.memory_space<vmem>>, %arg2: memref<8x1xf32, #tpu.memory_space<vmem>>, %arg3: memref<1x16x32xf32, #tpu.memory_space<vmem>>, %arg4: memref<1x8x32xf32, #tpu.memory_space<vmem>>) attributes {dimension_semantics = [#tpu.dimension_semantics<parallel>], iteration_bounds = array<i64: 2>, scalar_prefetch = 0 : i64, scratch_operands = 0 : i64, tpu.core_type = #tpu.core_type<tc>, window_params = [{pipeline_mode = #tpu.pipeline_mode<synchronous>, transform_indices = @transform_0, window_bounds = array<i64: 8, 16>}, {pipeline_mode = #tpu.pipeline_mode<synchronous>, transform_indices = @transform_1, window_bounds = array<i64: 8, 1>}, {transform_indices = @transform_2, window_bounds = array<i64: 1, 16, 32>}, {transform_indices = @transform_3, window_bounds = array<i64: 1, 8, 32>}]} {
    %c0 = arith.constant 0 : index
    %c0_0 = arith.constant 0 : index
    %0 = vector.load %arg1[%c0, %c0_0] : memref<8x16xf32, #tpu.memory_space<vmem>>, vector<8x16xf32>
    %c0_1 = arith.constant 0 : index
    %c0_2 = arith.constant 0 : index
    %c0_3 = arith.constant 0 : index
    %1 = vector.load %arg3[%c0_1, %c0_2, %c0_3] : memref<1x16x32xf32, #tpu.memory_space<vmem>>, vector<1x16x32xf32>
    %2 = vector.shape_cast %1 : vector<1x16x32xf32> to vector<16x32xf32>
    %cst = arith.constant dense<0.000000e+00> : vector<8x32xf32>
    %3 = tpu.matmul %0, %2, %cst {dimension_numbers = #tpu.dot_dimension_numbers<[1], [0], [0], [1], [0, 0, 1, 1], [], []>} : vector<8x16xf32>, vector<16x32xf32>, vector<8x32xf32> -> vector<8x32xf32>
    %c0_4 = arith.constant 0 : index
    %c0_5 = arith.constant 0 : index
    %4 = vector.load %arg2[%c0_4, %c0_5] : memref<8x1xf32, #tpu.memory_space<vmem>>, vector<8x1xf32>
    %5 = vector.broadcast %4 : vector<8x1xf32> to vector<8x32xf32>
    %6 = arith.addf %3, %5 : vector<8x32xf32>
    %c0_6 = arith.constant 0 : index
    %c0_7 = arith.constant 0 : index
    %c0_8 = arith.constant 0 : index
    %7 = vector.load %arg4[%c0_6, %c0_7, %c0_8] : memref<1x8x32xf32, #tpu.memory_space<vmem>>, vector<1x8x32xf32>
    %8 = vector.shape_cast %7 : vector<1x8x32xf32> to vector<8x32xf32>
    %9 = vector.shape_cast %6 : vector<8x32xf32> to vector<1x8x32xf32>
    tpu.vector_store %arg4[%c0_6, %c0_7, %c0_8], %9 {strides = array<i32>} : memref<1x8x32xf32, #tpu.memory_space<vmem>>, vector<1x8x32xf32>,
    return
  }
  func.func @transform_0(%arg0: i32) -> (i32, i32) {
    %c0_i32 = arith.constant 0 : i32
    %c0_i32_0 = arith.constant 0 : i32
    %c0_i32_1 = arith.constant 0 : i32
    return %c0_i32, %c0_i32_0 : i32, i32
  }
  func.func @transform_1(%arg0: i32) -> (i32, i32) {
    %c0_i32 = arith.constant 0 : i32
    %c0_i32_0 = arith.constant 0 : i32
    %c0_i32_1 = arith.constant 0 : i32
    return %c0_i32, %c0_i32_0 : i32, i32
  }
  func.func @transform_2(%arg0: i32) -> (i32, i32, i32) {
    %c0_i32 = arith.constant 0 : i32
    %c0_i32_0 = arith.constant 0 : i32
    %c0_i32_1 = arith.constant 0 : i32
    return %arg0, %c0_i32, %c0_i32_0 : i32, i32, i32
  }
  func.func @transform_3(%arg0: i32) -> (i32, i32, i32) {
    %c0_i32 = arith.constant 0 : i32
    %c0_i32_0 = arith.constant 0 : i32
    %c0_i32_1 = arith.constant 0 : i32
    return %arg0, %c0_i32, %c0_i32_0 : i32, i32, i32
  }
}

module attributes {stable_mosaic.version = 11 : i64} {
  func.func @_tap_acc_kernel(%arg0: i32, %arg1: memref<3x8x4xf32, #tpu.memory_space<vmem>>, %arg2: memref<8x1xf32, #tpu.memory_space<vmem>>, %arg3: memref<1x4x80xf32, #tpu.memory_space<vmem>>, %arg4: memref<1x8x48xf32, #tpu.memory_space<vmem>>) attributes {dimension_semantics = [#tpu.dimension_semantics<parallel>], iteration_bounds = array<i64: 2>, scalar_prefetch = 0 : i64, scratch_operands = 0 : i64, tpu.core_type = #tpu.core_type<tc>, window_params = [{pipeline_mode = #tpu.pipeline_mode<synchronous>, transform_indices = @transform_0, window_bounds = array<i64: 3, 8, 4>}, {pipeline_mode = #tpu.pipeline_mode<synchronous>, transform_indices = @transform_1, window_bounds = array<i64: 8, 1>}, {transform_indices = @transform_2, window_bounds = array<i64: 1, 4, 80>}, {transform_indices = @transform_3, window_bounds = array<i64: 1, 8, 48>}]} {
    %cst = arith.constant 0.000000e+00 : f32
    %0 = vector.broadcast %cst : f32 to vector<8x48xf32>
    %c0 = arith.constant 0 : index
    %c0_0 = arith.constant 0 : index
    %c0_1 = arith.constant 0 : index
    %1 = vector.load %arg1[%c0, %c0_0, %c0_1] : memref<3x8x4xf32, #tpu.memory_space<vmem>>, vector<1x8x4xf32>
    %2 = vector.shape_cast %1 : vector<1x8x4xf32> to vector<8x4xf32>
    %c0_2 = arith.constant 0 : index
    %c0_3 = arith.constant 0 : index
    %c0_4 = arith.constant 0 : index
    %3 = vector.load %arg3[%c0_2, %c0_3, %c0_4] : memref<1x4x80xf32, #tpu.memory_space<vmem>>, vector<1x4x48xf32>
    %4 = vector.shape_cast %3 : vector<1x4x48xf32> to vector<4x48xf32>
    %cst_5 = arith.constant dense<0.000000e+00> : vector<8x48xf32>
    %5 = tpu.matmul %2, %4, %cst_5 {dimension_numbers = #tpu.dot_dimension_numbers<[1], [0], [0], [1], [0, 0, 1, 1], [], []>} : vector<8x4xf32>, vector<4x48xf32>, vector<8x48xf32> -> vector<8x48xf32>
    %6 = arith.addf %0, %5 : vector<8x48xf32>
    %c1 = arith.constant 1 : index
    %c0_6 = arith.constant 0 : index
    %c0_7 = arith.constant 0 : index
    %7 = vector.load %arg1[%c1, %c0_6, %c0_7] : memref<3x8x4xf32, #tpu.memory_space<vmem>>, vector<1x8x4xf32>
    %8 = vector.shape_cast %7 : vector<1x8x4xf32> to vector<8x4xf32>
    %c0_8 = arith.constant 0 : index
    %c0_9 = arith.constant 0 : index
    %c16 = arith.constant 16 : index
    %9 = vector.load %arg3[%c0_8, %c0_9, %c16] : memref<1x4x80xf32, #tpu.memory_space<vmem>>, vector<1x4x48xf32>
    %10 = vector.shape_cast %9 : vector<1x4x48xf32> to vector<4x48xf32>
    %cst_10 = arith.constant dense<0.000000e+00> : vector<8x48xf32>
    %11 = tpu.matmul %8, %10, %cst_10 {dimension_numbers = #tpu.dot_dimension_numbers<[1], [0], [0], [1], [0, 0, 1, 1], [], []>} : vector<8x4xf32>, vector<4x48xf32>, vector<8x48xf32> -> vector<8x48xf32>
    %12 = arith.addf %6, %11 : vector<8x48xf32>
    %c2 = arith.constant 2 : index
    %c0_11 = arith.constant 0 : index
    %c0_12 = arith.constant 0 : index
    %13 = vector.load %arg1[%c2, %c0_11, %c0_12] : memref<3x8x4xf32, #tpu.memory_space<vmem>>, vector<1x8x4xf32>
    %14 = vector.shape_cast %13 : vector<1x8x4xf32> to vector<8x4xf32>
    %c0_13 = arith.constant 0 : index
    %c0_14 = arith.constant 0 : index
    %c32 = arith.constant 32 : index
    %15 = vector.load %arg3[%c0_13, %c0_14, %c32] : memref<1x4x80xf32, #tpu.memory_space<vmem>>, vector<1x4x48xf32>
    %16 = vector.shape_cast %15 : vector<1x4x48xf32> to vector<4x48xf32>
    %cst_15 = arith.constant dense<0.000000e+00> : vector<8x48xf32>
    %17 = tpu.matmul %14, %16, %cst_15 {dimension_numbers = #tpu.dot_dimension_numbers<[1], [0], [0], [1], [0, 0, 1, 1], [], []>} : vector<8x4xf32>, vector<4x48xf32>, vector<8x48xf32> -> vector<8x48xf32>
    %18 = arith.addf %12, %17 : vector<8x48xf32>
    %c0_16 = arith.constant 0 : index
    %c0_17 = arith.constant 0 : index
    %19 = vector.load %arg2[%c0_16, %c0_17] : memref<8x1xf32, #tpu.memory_space<vmem>>, vector<8x1xf32>
    %20 = vector.broadcast %19 : vector<8x1xf32> to vector<8x48xf32>
    %21 = arith.addf %18, %20 : vector<8x48xf32>
    %c0_18 = arith.constant 0 : index
    %c0_19 = arith.constant 0 : index
    %c0_20 = arith.constant 0 : index
    %22 = vector.load %arg4[%c0_18, %c0_19, %c0_20] : memref<1x8x48xf32, #tpu.memory_space<vmem>>, vector<1x8x48xf32>
    %23 = vector.shape_cast %22 : vector<1x8x48xf32> to vector<8x48xf32>
    %24 = vector.shape_cast %21 : vector<8x48xf32> to vector<1x8x48xf32>
    tpu.vector_store %arg4[%c0_18, %c0_19, %c0_20], %24 {strides = array<i32>} : memref<1x8x48xf32, #tpu.memory_space<vmem>>, vector<1x8x48xf32>,
    return
  }
  func.func @transform_0(%arg0: i32) -> (i32, i32, i32) {
    %c0_i32 = arith.constant 0 : i32
    %c0_i32_0 = arith.constant 0 : i32
    %c0_i32_1 = arith.constant 0 : i32
    %c0_i32_2 = arith.constant 0 : i32
    return %c0_i32, %c0_i32_0, %c0_i32_1 : i32, i32, i32
  }
  func.func @transform_1(%arg0: i32) -> (i32, i32) {
    %c0_i32 = arith.constant 0 : i32
    %c0_i32_0 = arith.constant 0 : i32
    %c0_i32_1 = arith.constant 0 : i32
    return %c0_i32, %c0_i32_0 : i32, i32
  }
  func.func @transform_2(%arg0: i32) -> (i32, i32, i32) {
    %c0_i32 = arith.constant 0 : i32
    %c0_i32_0 = arith.constant 0 : i32
    %c0_i32_1 = arith.constant 0 : i32
    return %arg0, %c0_i32, %c0_i32_0 : i32, i32, i32
  }
  func.func @transform_3(%arg0: i32) -> (i32, i32, i32) {
    %c0_i32 = arith.constant 0 : i32
    %c0_i32_0 = arith.constant 0 : i32
    %c0_i32_1 = arith.constant 0 : i32
    return %arg0, %c0_i32, %c0_i32_0 : i32, i32, i32
  }
}

</mosaic_0001>

<llo_original>
// kernel: squeeze.5
$region0: #{squeeze.5}
  %s0 = inlined_call_operand.vmem [shape: f32[8,4,16], index: 0, kind: input, shape index: {}]
  %s1 = inlined_call_operand.vmem [shape: f32[8,64], index: 1, kind: output, shape index: {}]
  $region1: #{squeeze.5} parent=0
    #allocation0 [shape = 'u8[32768]{0}', space=vmem, size = 0x8000, scoped, tag = 'scoped mem for input reshape']
    %s3 = sshllo.u32 0, 4
    %s4 = smul.addr 4, 7
    %s5 = scalar_lea.vmem %s0, %s4
    %v6 = vld [vmem:[%s5] sm:%s3]
    %s7 = scalar_lea.vmem [#allocation0], 56
    %8 = vst [vmem:[%s7] sm:%s3] %v6
    %s9 = smul.addr 4, 6
    %s10 = scalar_lea.vmem %s0, %s9
    %v11 = vld [vmem:[%s10] sm:%s3]
    %s12 = scalar_lea.vmem [#allocation0], 48
    %13 = vst [vmem:[%s12] sm:%s3] %v11
    %s14 = smul.addr 4, 5
    %s15 = scalar_lea.vmem %s0, %s14
    %v16 = vld [vmem:[%s15] sm:%s3]
    %s17 = scalar_lea.vmem [#allocation0], 40
    %18 = vst [vmem:[%s17] sm:%s3] %v16
    %s19 = smul.addr 4, 4
    %s20 = scalar_lea.vmem %s0, %s19
    %v21 = vld [vmem:[%s20] sm:%s3]
    %s22 = scalar_lea.vmem [#allocation0], 32
    %23 = vst [vmem:[%s22] sm:%s3] %v21
    %s24 = smul.addr 4, 3
    %s25 = scalar_lea.vmem %s0, %s24
    %v26 = vld [vmem:[%s25] sm:%s3]
    %s27 = scalar_lea.vmem [#allocation0], 24
    %28 = vst [vmem:[%s27] sm:%s3] %v26
    %s29 = smul.addr 4, 2
    %s30 = scalar_lea.vmem %s0, %s29
    %v31 = vld [vmem:[%s30] sm:%s3]
    %s32 = scalar_lea.vmem [#allocation0], 16
    %33 = vst [vmem:[%s32] sm:%s3] %v31
    %s34 = scalar_lea.vmem %s0, 4
    %v35 = vld [vmem:[%s34] sm:%s3]
    %s36 = scalar_lea.vmem [#allocation0], 8
    %37 = vst [vmem:[%s36] sm:%s3] %v35
    %v38 = vld [vmem:[%s0] sm:%s3]
    %39 = vst [vmem:[#allocation0] sm:%s3] %v38
    %v40 = vld [vmem:[#allocation0] ss:$8 sm:$0xf]
    %v41 = vld [vmem:[#allocation0] ss:$8 sm:$0xf0]
    %vm42 = vcmask 1047556
    %v43 = vsel %vm42, %v41, %v40
    %vm44 = vcmask 130048
    %45 = vst.msk [vmem:[%s1] sm:$0xff] %vm44, %v43
    %s46 = scalar_lea.vmem [#allocation0], 3
    %v47 = vld [vmem:[%s46] ss:$8 sm:$0xf]
    %s48 = scalar_lea.vmem [#allocation0], 3
    %v49 = vld [vmem:[%s48] ss:$8 sm:$0xf0]
    %vm50 = vcmask 1047556
    %v51 = vsel %vm50, %v49, %v47
    %52 = vrot.lane.b32.xlu0 %v51, 48
    %v53 = vpop.permute.xlu0 %52
    %vm54 = vcmask 523648
    %55 = vst.msk [vmem:[%s1] sm:$0xff] %vm54, %v53
    %s56 = scalar_lea.vmem [#allocation0], 2
    %v57 = vld [vmem:[%s56] ss:$8 sm:$0xf]
    %s58 = scalar_lea.vmem [#allocation0], 2
    %v59 = vld [vmem:[%s58] ss:$8 sm:$0xf0]
    %vm60 = vcmask 1047556
    %v61 = vsel %vm60, %v59, %v57
    %62 = vrot.lane.b32.xlu0 %v61, 32
    %v63 = vpop.permute.xlu0 %62
    %vm64 = vcmask 392448
    %65 = vst.msk [vmem:[%s1] sm:$0xff] %vm64, %v63
    %s66 = scalar_lea.vmem [#allocation0], 1
    %v67 = vld [vmem:[%s66] ss:$8 sm:$0xf]
    %s68 = scalar_lea.vmem [#allocation0], 1
    %v69 = vld [vmem:[%s68] ss:$8 sm:$0xf0]
    %vm70 = vcmask 1047556
    %v71 = vsel %vm70, %v69, %v67
    %72 = vrot.lane.b32.xlu0 %v71, 16
    %v73 = vpop.permute.xlu0 %72
    %vm74 = vcmask 261248
    %75 = vst.msk [vmem:[%s1] sm:$0xff] %vm74, %v73

// kernel: _forward_impl.5
$region0: #{_forward_impl.5}
  #allocation0 [shape = 'u32[]', space=smem, size = 0x4, offset = 0x4, fixed_abs, tag = 'smem constant byte address 0x4 - core index']
  #allocation1 [shape = 'u32[144,128]{1,0:T(1,128)}', space=vmem, size = 0x12000, scoped, tag = 'internal scratch']
  %s0 = inlined_call_operand.vmem [shape: f32[8,64], index: 0, kind: input, shape index: {}]
  %s1 = inlined_call_operand.vmem [shape: f32[8,1], index: 1, kind: input, shape index: {}]
  %s2 = inlined_call_operand.vmem [shape: f32[2,64,16], index: 2, kind: input, shape index: {}]
  %s3 = inlined_call_operand.hbm [shape: f32[2,8,16], index: 3, kind: output, shape index: {}]
  %s4 = sld [smem:[#allocation0]]
  $region45: #{_forward_impl.5} parent=0
    _
  %s6 = ssub.s32 1, %s4
  %s7 = scalar_select 0, %s6, %s4
  $region1: #{_forward_impl.5} parent=0
    #allocation2 [shape = 'u8[8192]{0}', space=vmem, size = 0x2000, scoped, tag = 'output window, operand 0']
    #allocation3 [shape = 's32[2]{0}', space=sflag, size = 0x8, scoped, tag = 'scoped memory for _forward_impl.5']
    %8 = vsyncpa [#allocation3], 0
    %s9 = scalar_lea.sflag [#allocation3], 1
    %10 = vsyncpa %s9, 0
    loop: start=0, step=1, limit=4
    $region2: #{_forward_impl.5} parent=1 // loop_pre_header
      _
    $region3: #{_forward_impl.5} parent=1 // loop_header
      %s12 = sphi 0, %s16
      %p13 = scmp.ge.s32.totalorder %s12, 4
      %s20 = sphi 0, %s20
      %s22 = sphi 0, %s20
      %s23 = sphi 0, %s22
      %s37 = sphi 0, %s23
      %s41 = sphi 0, %s41
      %s43 = sphi 0, %s41
      %s44 = sphi 0, %s43
      %s58 = sphi 0, %s44
      %s64 = sphi 0, %s66
      %s67 = sphi 0, %s64
      %s68 = sphi 0, %s67
      %s84 = sphi 0, %s68
      %s90 = sphi 0, %s92
      %s93 = sphi 0, %s90
      %s94 = sphi 0, %s93
      %s110 = sphi 0, %s94
    $region4: #{_forward_impl.5} parent=1 // loop_header_branch
      %15 = sbr.rel (%p13) target = $region8
    $region5: #{_forward_impl.5} parent=1 // loop_body
      %s17 = ssub.s32 %s12, 1
      %s18 = ssub.s32 %s12, 2
      %s19 = sadd.s32 %s12, 1
      %s21 = sadd.s32 %s20, 1
      %p24 = scmp.eq.s32.totalorder %s12, 1
      %p25 = scmp.ne.s32.totalorder %s20, %s22
      %p26 = scmp.eq.s32.totalorder %s12, 0
      %p27 = por %p25, %p26
      %p28 = scmp.ne.s32.totalorder %s20, %s22
      %p29 = scmp.eq.s32.totalorder %s17, 1
      %p30 = por %p28, %p29
      %p31 = scmp.ne.s32.totalorder %s22, %s23
      %p32 = scmp.eq.s32.totalorder %s17, 0
      %p33 = por %p31, %p32
      %p34 = scmp.ne.s32.totalorder %s22, %s23
      %p35 = scmp.eq.s32.totalorder %s18, 1
      %p36 = por %p34, %p35
      %p38 = scmp.ne.s32.totalorder %s23, %s37
      %p39 = scmp.eq.s32.totalorder %s18, 0
      %p40 = por %p38, %p39
      %s42 = sadd.s32 %s41, 1
      %p45 = scmp.eq.s32.totalorder %s12, 1
      %p46 = scmp.ne.s32.totalorder %s41, %s43
      %p47 = scmp.eq.s32.totalorder %s12, 0
      %p48 = por %p46, %p47
      %p49 = scmp.ne.s32.totalorder %s41, %s43
      %p50 = scmp.eq.s32.totalorder %s17, 1
      %p51 = por %p49, %p50
      %p52 = scmp.ne.s32.totalorder %s43, %s44
      %p53 = scmp.eq.s32.totalorder %s17, 0
      %p54 = por %p52, %p53
      %p55 = scmp.ne.s32.totalorder %s43, %s44
      %p56 = scmp.eq.s32.totalorder %s18, 1
      %p57 = por %p55, %p56
      %p59 = scmp.ne.s32.totalorder %s44, %s58
      %p60 = scmp.eq.s32.totalorder %s18, 0
      %p61 = por %p59, %p60
      %s62 = ssub.s32 %s12, %s19
      %p63 = scmp.eq.s32.totalorder %s62, 0
      %s65 = sadd.s32 %s64, 1
      %s66 = scalar_select %p63, %s64, %s65
      %p69 = pneg %p63
      %p70 = scmp.eq.s32.totalorder %s12, 1
      %p71 = por %p69, %p70
      %p72 = scmp.ne.s32.totalorder %s64, %s67
      %p73 = scmp.eq.s32.totalorder %s12, 0
      %p74 = por %p72, %p73
      %p75 = scmp.ne.s32.totalorder %s64, %s67
      %p76 = scmp.eq.s32.totalorder %s17, 1
      %p77 = por %p75, %p76
      %p78 = scmp.ne.s32.totalorder %s67, %s68
      %p79 = scmp.eq.s32.totalorder %s17, 0
      %p80 = por %p78, %p79
      %p81 = scmp.ne.s32.totalorder %s67, %s68
      %p82 = scmp.eq.s32.totalorder %s18, 1
      %p83 = por %p81, %p82
      %p85 = scmp.ne.s32.totalorder %s68, %s84
      %p86 = scmp.eq.s32.totalorder %s18, 0
      %p87 = por %p85, %p86
      %s88 = ssub.s32 %s12, %s19
      %p89 = scmp.eq.s32.totalorder %s88, 0
      %s91 = sadd.s32 %s90, 1
      %s92 = scalar_select %p89, %s90, %s91
      %p95 = pneg %p89
      %p96 = scmp.eq.s32.totalorder %s12, 1
      %p97 = por %p95, %p96
      %p98 = scmp.ne.s32.totalorder %s90, %s93
      %p99 = scmp.eq.s32.totalorder %s12, 0
      %p100 = por %p98, %p99
      %p101 = scmp.ne.s32.totalorder %s90, %s93
      %p102 = scmp.eq.s32.totalorder %s17, 1
      %p103 = por %p101, %p102
      %p104 = scmp.ne.s32.totalorder %s93, %s94
      %p105 = scmp.eq.s32.totalorder %s17, 0
      %p106 = por %p104, %p105
      %p107 = scmp.ne.s32.totalorder %s93, %s94
      %p108 = scmp.eq.s32.totalorder %s18, 1
      %p109 = por %p107, %p108
      %p111 = scmp.ne.s32.totalorder %s94, %s110
      %p112 = scmp.eq.s32.totalorder %s18, 0
      %p113 = por %p111, %p112
      %p114 = scmp.le.s32.totalorder 1, %s12
      %p115 = scmp.lt.s32.totalorder %s12, 3
      %p116 = pnand %p114, %p115
      %p117 = pneg %p116
      // Predicated region
      $region9: #{_forward_impl.5} parent=5 // pred_check
        _
      $region10: #{_forward_impl.5} parent=5 // pred_check_branch
        %119 = sbr.rel (%p116) target = $region12
      $region11: #{_forward_impl.5} parent=5 // pred_region
        %s120 = ssub.s32 %s12, 1
        // Predicated region
        $region13: #{_forward_impl.5} parent=11 // pred_check
          %p121 = pneg %p33
        $region14: #{_forward_impl.5} parent=11 // pred_check_branch
          %123 = sbr.rel (%p121) target = $region16
        $region15: #{_forward_impl.5} parent=11 // pred_region
          _
        $region16: #{_forward_impl.5} parent=11 // pred_fallthru
          _
        // Predicated region
        $region17: #{_forward_impl.5} parent=11 // pred_check
          %p124 = pneg %p54
        $region18: #{_forward_impl.5} parent=11 // pred_check_branch
          %126 = sbr.rel (%p124) target = $region20
        $region19: #{_forward_impl.5} parent=11 // pred_region
          _
        $region20: #{_forward_impl.5} parent=11 // pred_fallthru
          _
      $region12: #{_forward_impl.5} parent=5 // pred_fallthru
        _
      %p127 = scmp.lt.s32.totalorder %s12, 2
      // Predicated region
      $region21: #{_forward_impl.5} parent=5 // pred_check
        %p128 = pneg %p127
      $region22: #{_forward_impl.5} parent=5 // pred_check_branch
        %130 = sbr.rel (%p128) target = $region24
      $region23: #{_forward_impl.5} parent=5 // pred_region
        // Predicated region
        $region25: #{_forward_impl.5} parent=23 // pred_check
          %p131 = pneg %p74
        $region26: #{_forward_impl.5} parent=23 // pred_check_branch
          %133 = sbr.rel (%p131) target = $region28
        $region27: #{_forward_impl.5} parent=23 // pred_region
          %p134 = scmp.lt.s32.totalorder %s12, 1
          %s135 = scalar_select %p134, %s12, 1
          %s136 = smul.addr %s135, 8
          %s137 = smul.addr %s136, 8
          %s138 = scalar_lea.vmem %s2, %s137
        $region28: #{_forward_impl.5} parent=23 // pred_fallthru
          _
      $region24: #{_forward_impl.5} parent=5 // pred_fallthru
        _
      %p139 = scmp.le.s32.totalorder 1, %s12
      %p140 = scmp.lt.s32.totalorder %s12, 3
      %p141 = pnand %p139, %p140
      %p142 = pneg %p141
      // Predicated region
      $region29: #{_forward_impl.5} parent=5 // pred_check
        _
      $region30: #{_forward_impl.5} parent=5 // pred_check_branch
        %144 = sbr.rel (%p141) target = $region32
      $region31: #{_forward_impl.5} parent=5 // pred_region
        %s145 = ssub.s32 %s12, 1
        %p146 = pneg %p33
        %p147 = pneg %p30
        %p148 = pneg %p54
        %p149 = pneg %p51
        %p150 = scmp.lt.s32.totalorder %s17, 1
        %s151 = scalar_select %p150, %s17, 1
        %s152 = smul.addr %s151, 8
        %s153 = smul.addr %s152, 8
        %s154 = scalar_lea.vmem %s2, %s153
        %p155 = pneg %p80
        %p156 = pneg %p77
        %p157 = pneg %p106
        %p158 = pneg %p103
        %s159 = sand.u32 %s93, 1
        %s160 = scalar_lea.sflag [#allocation3], %s159
        %s161 = sand.u32 %s93, 1
        %s162 = smul.addr %s161, 8
        %s163 = scalar_lea.vmem [#allocation2], %s162
        %p164 = scmp.lt.s32.totalorder %s17, 1
        %s165 = scalar_select %p164, %s17, 1
        %s166 = smul.addr %s165, 8
        %s167 = smul.addr %s166, 8
        %s168 = scalar_lea.vmem %s2, %s167
        %v169 = vld [vmem:[%s0] sm:$0xff]
        %v170 = vld [vmem:[%s168] sm:$0xff]
        %v171 = vld [vmem:[%s168 + $0x8] sm:$0xff]
        %v172 = vld [vmem:[%s168 + $0x10] sm:$0xff]
        %v173 = vld [vmem:[%s168 + $0x18] sm:$0xff]
        %v174 = vld [vmem:[%s168 + $0x20] sm:$0xff]
        %v175 = vld [vmem:[%s168 + $0x28] sm:$0xff]
        %v176 = vld [vmem:[%s168 + $0x30] sm:$0xff]
        %v177 = vld [vmem:[%s168 + $0x38] sm:$0xff]
        %v178 = vld [vmem:[%s1] sm:$0xff]
        %180 = vset.pattern.permute.xlu0 0
        %181 = vperm.xlu0 %180, %v178
        %v182 = vpop.permute.xlu0 %181
        %vm184 = vcmask 523264
        %v186 = vsel %vm184, %v169, 0
        %188 = vmatprep.subr.mxu0 0.0
        %189 = vmatpush1.msra.mxu0 %v170
        %190 = vmatprep.subr.mxu0 0.0
        %191 = vmatpush1.msra.mxu0 %v171
        %192 = vmatprep.subr.mxu0 0.0
        %193 = vmatpush1.msra.mxu0 %v172
        %194 = vmatprep.subr.mxu0 0.0
        %195 = vmatpush1.msra.mxu0 %v173
        %196 = vmatprep.subr.mxu0 0.0
        %197 = vmatpush1.msra.mxu0 %v174
        %198 = vmatprep.subr.mxu0 0.0
        %199 = vmatpush1.msra.mxu0 %v175
        %200 = vmatprep.subr.mxu0 0.0
        %201 = vmatpush1.msra.mxu0 %v176
        %202 = vmatprep.subr.mxu0 0.0
        %203 = vmatpush1.msra.mxu0 %v177
        %204 = vmatprep.subr.mxu0 0.0
        %205 = vmatpush1.msra.mxu0 0.0
        %206 = vmatprep.subr.mxu0 0.0
        %207 = vmatpush1.msra.mxu0 0.0
        %208 = vmatprep.subr.mxu0 0.0
        %209 = vmatpush1.msra.mxu0 0.0
        %210 = vmatprep.subr.mxu0 0.0
        %211 = vmatpush1.msra.mxu0 0.0
        %212 = vmatprep.subr.mxu0 0.0
        %213 = vmatpush1.msra.mxu0 0.0
        %214 = vmatprep.subr.mxu0 0.0
        %215 = vmatpush1.msra.mxu0 0.0
        %216 = vmatprep.subr.mxu0 0.0
        %217 = vmatpush1.msra.mxu0 0.0
        %218 = vmatprep.subr.mxu0 0.0
        %219 = vmatpush1.msra.mxu0 0.0
        %220 = vmatprep.subr.mxu0 0.0
        %221 = vmatpush1.msra.mxu0 0.0
        %222 = vmatprep.subr.mxu0 0.0
        %223 = vmatpush1.msra.mxu0 0.0
        %224 = vmatprep.subr.mxu0 0.0
        %225 = vmatpush1.msra.mxu0 0.0
        %226 = vmatprep.subr.mxu0 0.0
        %227 = vmatpush1.msra.mxu0 0.0
        %228 = vmatprep.subr.mxu0 0.0
        %229 = vmatpush1.msra.mxu0 0.0
        %230 = vmatprep.subr.mxu0 0.0
        %231 = vmatpush1.msra.mxu0 0.0
        %232 = vmatprep.subr.mxu0 0.0
        %233 = vmatpush1.msra.mxu0 0.0
        %234 = vmatprep.subr.mxu0 0.0
        %235 = vmatpush1.msra.mxu0 0.0
        %236 = vmatprep.subr.mxu0 0.0
        %237 = vmatpush1.msra.mxu0 0.0
        %238 = vmatprep.subr.mxu0 0.0
        %239 = vmatpush1.msra.mxu0 0.0
        %240 = vmatprep.subr.mxu0 0.0
        %241 = vmatpush1.msra.mxu0 0.0
        %242 = vmatprep.subr.mxu0 0.0
        %243 = vmatpush1.msra.mxu0 0.0
        %244 = vmatprep.subr.mxu0 0.0
        %245 = vmatpush1.msra.mxu0 0.0
        %246 = vmatprep.subr.mxu0 0.0
        %247 = vmatpush1.msra.mxu0 0.0
        %248 = vmatprep.subr.mxu0 0.0
        %249 = vmatpush1.msra.mxu0 0.0
        %250 = vmatprep.subr.mxu0 0.0
        %251 = vmatpush1.msra.mxu0 0.0
        %252 = vmatprep.mubr.f32.mxu0 0.0
        %253 = vmatmul.mubr.f32.gmra.mrb[0].mxu0 %v186
        %v254 = vpop.f32.mrb[0].mxu0
        %v255 = vadd.f32 %v182, %v254
        %v256 = vpop.f32.mrb[0].mxu0
        %257 = vdwg.mxu0
        %vm258 = vcmask 130048
        %259 = vst.msk [vmem:[%s163] sm:$0xff] %vm258, %v255
        %s260 = sand.u32 %s93, 1
        %s261 = scalar_lea.sflag [#allocation3], %s260
        %s262 = sand.u32 %s93, 1
        %s263 = smul.addr %s262, 8
        %s264 = scalar_lea.vmem [#allocation2], %s263
        // Predicated region
        $region33: #{_forward_impl.5} parent=31 // pred_check
          %p265 = pneg %p103
        $region34: #{_forward_impl.5} parent=31 // pred_check_branch
          %267 = sbr.rel (%p265) target = $region36
        $region35: #{_forward_impl.5} parent=31 // pred_region
          %s269 = ssub.s32 128, 128
          %270 = vsyncadd %s261, %s269
          %s271 = smul.addr %s17, 128
          %s272 = scalar_lea.hbm %s3, %s271
          %s274 = sshll.u32 %s264, 4
          %s275 = int_to_ptr.vmem [resolvable:$true] %s274
          %277 = dma.vmem_to_hbm [thread:$0]  %s275, 128, %s272, %s261
        $region36: #{_forward_impl.5} parent=31 // pred_fallthru
          _
      $region32: #{_forward_impl.5} parent=5 // pred_fallthru
        _
      %p278 = scmp.le.s32.totalorder 2, %s12
      // Predicated region
      $region37: #{_forward_impl.5} parent=5 // pred_check
        %p279 = pneg %p278
      $region38: #{_forward_impl.5} parent=5 // pred_check_branch
        %281 = sbr.rel (%p279) target = $region40
      $region39: #{_forward_impl.5} parent=5 // pred_region
        %s282 = ssub.s32 %s12, 2
        // Predicated region
        $region41: #{_forward_impl.5} parent=39 // pred_check
          %p283 = pneg %p109
        $region42: #{_forward_impl.5} parent=39 // pred_check_branch
          %285 = sbr.rel (%p283) target = $region44
        $region43: #{_forward_impl.5} parent=39 // pred_region
          %s286 = sand.u32 %s94, 1
          %s287 = scalar_lea.sflag [#allocation3], %s286
          %s288 = sand.u32 %s94, 1
          %s289 = smul.addr %s288, 8
          %s290 = scalar_lea.vmem [#allocation2], %s289
          %291 = dma.done %s287, 128
        $region44: #{_forward_impl.5} parent=39 // pred_fallthru
          _
      $region40: #{_forward_impl.5} parent=5 // pred_fallthru
        _
    $region6: #{_forward_impl.5} parent=1 // loop_footer
      %s16 = sadd.s32 1, %s12
    $region7: #{_forward_impl.5} parent=1 // loop_footer_branch
      %11 = sbr.rel target = $region3
    $region8: #{_forward_impl.5} parent=1 // loop_exit
      _
    %292 = vsyncpa [#allocation3], 1
    %s293 = scalar_lea.sflag [#allocation3], 1
    %294 = vsyncpa %s293, 1

// kernel: _forward_impl.4
$region0: #{_forward_impl.4}
  #allocation0 [shape = 'u32[]', space=smem, size = 0x4, offset = 0x4, fixed_abs, tag = 'smem constant byte address 0x4 - core index']
  #allocation1 [shape = 'u32[144,128]{1,0:T(1,128)}', space=vmem, size = 0x12000, scoped, tag = 'internal scratch']
  %s0 = inlined_call_operand.vmem [shape: f32[8,16], index: 0, kind: input, shape index: {}]
  %s1 = inlined_call_operand.vmem [shape: f32[8,1], index: 1, kind: input, shape index: {}]
  %s2 = inlined_call_operand.vmem [shape: f32[2,16,32], index: 2, kind: input, shape index: {}]
  %s3 = inlined_call_operand.vmem [shape: f32[2,8,32], index: 3, kind: output, shape index: {}]
  %s4 = sld [smem:[#allocation0]]
  $region45: #{_forward_impl.4} parent=0
    _
  %s6 = ssub.s32 1, %s4
  %s7 = scalar_select 0, %s6, %s4
  loop: start=0, step=1, limit=4
  $region2: #{_forward_impl.4} parent=0 // loop_pre_header
    _
  $region3: #{_forward_impl.4} parent=0 // loop_header
    %s9 = sphi 0, %s13
    %p10 = scmp.ge.s32.totalorder %s9, 4
    %s17 = sphi 0, %s17
    %s19 = sphi 0, %s17
    %s20 = sphi 0, %s19
    %s34 = sphi 0, %s20
    %s38 = sphi 0, %s38
    %s40 = sphi 0, %s38
    %s41 = sphi 0, %s40
    %s55 = sphi 0, %s41
    %s61 = sphi 0, %s63
    %s64 = sphi 0, %s61
    %s65 = sphi 0, %s64
    %s81 = sphi 0, %s65
    %s87 = sphi 0, %s89
    %s90 = sphi 0, %s87
    %s91 = sphi 0, %s90
    %s107 = sphi 0, %s91
  $region4: #{_forward_impl.4} parent=0 // loop_header_branch
    %12 = sbr.rel (%p10) target = $region8
  $region5: #{_forward_impl.4} parent=0 // loop_body
    %s14 = ssub.s32 %s9, 1
    %s15 = ssub.s32 %s9, 2
    %s16 = sadd.s32 %s9, 1
    %s18 = sadd.s32 %s17, 1
    %p21 = scmp.eq.s32.totalorder %s9, 1
    %p22 = scmp.ne.s32.totalorder %s17, %s19
    %p23 = scmp.eq.s32.totalorder %s9, 0
    %p24 = por %p22, %p23
    %p25 = scmp.ne.s32.totalorder %s17, %s19
    %p26 = scmp.eq.s32.totalorder %s14, 1
    %p27 = por %p25, %p26
    %p28 = scmp.ne.s32.totalorder %s19, %s20
    %p29 = scmp.eq.s32.totalorder %s14, 0
    %p30 = por %p28, %p29
    %p31 = scmp.ne.s32.totalorder %s19, %s20
    %p32 = scmp.eq.s32.totalorder %s15, 1
    %p33 = por %p31, %p32
    %p35 = scmp.ne.s32.totalorder %s20, %s34
    %p36 = scmp.eq.s32.totalorder %s15, 0
    %p37 = por %p35, %p36
    %s39 = sadd.s32 %s38, 1
    %p42 = scmp.eq.s32.totalorder %s9, 1
    %p43 = scmp.ne.s32.totalorder %s38, %s40
    %p44 = scmp.eq.s32.totalorder %s9, 0
    %p45 = por %p43, %p44
    %p46 = scmp.ne.s32.totalorder %s38, %s40
    %p47 = scmp.eq.s32.totalorder %s14, 1
    %p48 = por %p46, %p47
    %p49 = scmp.ne.s32.totalorder %s40, %s41
    %p50 = scmp.eq.s32.totalorder %s14, 0
    %p51 = por %p49, %p50
    %p52 = scmp.ne.s32.totalorder %s40, %s41
    %p53 = scmp.eq.s32.totalorder %s15, 1
    %p54 = por %p52, %p53
    %p56 = scmp.ne.s32.totalorder %s41, %s55
    %p57 = scmp.eq.s32.totalorder %s15, 0
    %p58 = por %p56, %p57
    %s59 = ssub.s32 %s9, %s16
    %p60 = scmp.eq.s32.totalorder %s59, 0
    %s62 = sadd.s32 %s61, 1
    %s63 = scalar_select %p60, %s61, %s62
    %p66 = pneg %p60
    %p67 = scmp.eq.s32.totalorder %s9, 1
    %p68 = por %p66, %p67
    %p69 = scmp.ne.s32.totalorder %s61, %s64
    %p70 = scmp.eq.s32.totalorder %s9, 0
    %p71 = por %p69, %p70
    %p72 = scmp.ne.s32.totalorder %s61, %s64
    %p73 = scmp.eq.s32.totalorder %s14, 1
    %p74 = por %p72, %p73
    %p75 = scmp.ne.s32.totalorder %s64, %s65
    %p76 = scmp.eq.s32.totalorder %s14, 0
    %p77 = por %p75, %p76
    %p78 = scmp.ne.s32.totalorder %s64, %s65
    %p79 = scmp.eq.s32.totalorder %s15, 1
    %p80 = por %p78, %p79
    %p82 = scmp.ne.s32.totalorder %s65, %s81
    %p83 = scmp.eq.s32.totalorder %s15, 0
    %p84 = por %p82, %p83
    %s85 = ssub.s32 %s9, %s16
    %p86 = scmp.eq.s32.totalorder %s85, 0
    %s88 = sadd.s32 %s87, 1
    %s89 = scalar_select %p86, %s87, %s88
    %p92 = pneg %p86
    %p93 = scmp.eq.s32.totalorder %s9, 1
    %p94 = por %p92, %p93
    %p95 = scmp.ne.s32.totalorder %s87, %s90
    %p96 = scmp.eq.s32.totalorder %s9, 0
    %p97 = por %p95, %p96
    %p98 = scmp.ne.s32.totalorder %s87, %s90
    %p99 = scmp.eq.s32.totalorder %s14, 1
    %p100 = por %p98, %p99
    %p101 = scmp.ne.s32.totalorder %s90, %s91
    %p102 = scmp.eq.s32.totalorder %s14, 0
    %p103 = por %p101, %p102
    %p104 = scmp.ne.s32.totalorder %s90, %s91
    %p105 = scmp.eq.s32.totalorder %s15, 1
    %p106 = por %p104, %p105
    %p108 = scmp.ne.s32.totalorder %s91, %s107
    %p109 = scmp.eq.s32.totalorder %s15, 0
    %p110 = por %p108, %p109
    %p111 = scmp.le.s32.totalorder 1, %s9
    %p112 = scmp.lt.s32.totalorder %s9, 3
    %p113 = pnand %p111, %p112
    %p114 = pneg %p113
    // Predicated region
    $region9: #{_forward_impl.4} parent=5 // pred_check
      _
    $region10: #{_forward_impl.4} parent=5 // pred_check_branch
      %116 = sbr.rel (%p113) target = $region12
    $region11: #{_forward_impl.4} parent=5 // pred_region
      %s117 = ssub.s32 %s9, 1
      // Predicated region
      $region13: #{_forward_impl.4} parent=11 // pred_check
        %p118 = pneg %p30
      $region14: #{_forward_impl.4} parent=11 // pred_check_branch
        %120 = sbr.rel (%p118) target = $region16
      $region15: #{_forward_impl.4} parent=11 // pred_region
        _
      $region16: #{_forward_impl.4} parent=11 // pred_fallthru
        _
      // Predicated region
      $region17: #{_forward_impl.4} parent=11 // pred_check
        %p121 = pneg %p51
      $region18: #{_forward_impl.4} parent=11 // pred_check_branch
        %123 = sbr.rel (%p121) target = $region20
      $region19: #{_forward_impl.4} parent=11 // pred_region
        _
      $region20: #{_forward_impl.4} parent=11 // pred_fallthru
        _
    $region12: #{_forward_impl.4} parent=5 // pred_fallthru
      _
    %p124 = scmp.lt.s32.totalorder %s9, 2
    // Predicated region
    $region21: #{_forward_impl.4} parent=5 // pred_check
      %p125 = pneg %p124
    $region22: #{_forward_impl.4} parent=5 // pred_check_branch
      %127 = sbr.rel (%p125) target = $region24
    $region23: #{_forward_impl.4} parent=5 // pred_region
      // Predicated region
      $region25: #{_forward_impl.4} parent=23 // pred_check
        %p128 = pneg %p71
      $region26: #{_forward_impl.4} parent=23 // pred_check_branch
        %130 = sbr.rel (%p128) target = $region28
      $region27: #{_forward_impl.4} parent=23 // pred_region
        %p131 = scmp.lt.s32.totalorder %s9, 1
        %s132 = scalar_select %p131, %s9, 1
        %s133 = smul.addr %s132, 2
        %s134 = smul.addr %s133, 8
        %s135 = scalar_lea.vmem %s2, %s134
      $region28: #{_forward_impl.4} parent=23 // pred_fallthru
        _
    $region24: #{_forward_impl.4} parent=5 // pred_fallthru
      _
    %p136 = scmp.le.s32.totalorder 1, %s9
    %p137 = scmp.lt.s32.totalorder %s9, 3
    %p138 = pnand %p136, %p137
    %p139 = pneg %p138
    // Predicated region
    $region29: #{_forward_impl.4} parent=5 // pred_check
      _
    $region30: #{_forward_impl.4} parent=5 // pred_check_branch
      %141 = sbr.rel (%p138) target = $region32
    $region31: #{_forward_impl.4} parent=5 // pred_region
      %s142 = ssub.s32 %s9, 1
      %p143 = pneg %p30
      %p144 = pneg %p27
      %p145 = pneg %p51
      %p146 = pneg %p48
      %p147 = scmp.lt.s32.totalorder %s14, 1
      %s148 = scalar_select %p147, %s14, 1
      %s149 = smul.addr %s148, 2
      %s150 = smul.addr %s149, 8
      %s151 = scalar_lea.vmem %s2, %s150
      %p152 = pneg %p77
      %p153 = pneg %p74
      %p154 = pneg %p103
      %p155 = pneg %p100
      %p156 = scmp.lt.s32.totalorder %s14, 1
      %s157 = scalar_select %p156, %s14, 1
      %s158 = smul.addr %s157, 8
      %s159 = scalar_lea.vmem %s3, %s158
      %p160 = scmp.lt.s32.totalorder %s14, 1
      %s161 = scalar_select %p160, %s14, 1
      %s162 = smul.addr %s161, 2
      %s163 = smul.addr %s162, 8
      %s164 = scalar_lea.vmem %s2, %s163
      %p165 = scmp.lt.s32.totalorder %s14, 1
      %s166 = scalar_select %p165, %s14, 1
      %s167 = smul.addr %s166, 8
      %s168 = scalar_lea.vmem %s3, %s167
      %v169 = vld [vmem:[%s0] sm:$0xff]
      %v170 = vld [vmem:[%s164] sm:$0xff]
      %v171 = vld [vmem:[%s164 + $0x8] sm:$0xff]
      %v172 = vld [vmem:[%s1] sm:$0xff]
      %174 = vset.pattern.permute.xlu0 0
      %175 = vperm.xlu0 %174, %v172
      %v176 = vpop.permute.xlu0 %175
      %vm178 = vcmask 130048
      %v180 = vsel %vm178, %v169, 0
      %182 = vmatprep.subr.mxu0 0.0
      %183 = vmatpush1.msra.mxu0 %v170
      %184 = vmatprep.subr.mxu0 0.0
      %185 = vmatpush1.msra.mxu0 %v171
      %186 = vmatprep.subr.mxu0 0.0
      %187 = vmatpush1.msra.mxu0 0.0
      %188 = vmatprep.subr.mxu0 0.0
      %189 = vmatpush1.msra.mxu0 0.0
      %190 = vmatprep.subr.mxu0 0.0
      %191 = vmatpush1.msra.mxu0 0.0
      %192 = vmatprep.subr.mxu0 0.0
      %193 = vmatpush1.msra.mxu0 0.0
      %194 = vmatprep.subr.mxu0 0.0
      %195 = vmatpush1.msra.mxu0 0.0
      %196 = vmatprep.subr.mxu0 0.0
      %197 = vmatpush1.msra.mxu0 0.0
      %198 = vmatprep.subr.mxu0 0.0
      %199 = vmatpush1.msra.mxu0 0.0
      %200 = vmatprep.subr.mxu0 0.0
      %201 = vmatpush1.msra.mxu0 0.0
      %202 = vmatprep.subr.mxu0 0.0
      %203 = vmatpush1.msra.mxu0 0.0
      %204 = vmatprep.subr.mxu0 0.0
      %205 = vmatpush1.msra.mxu0 0.0
      %206 = vmatprep.subr.mxu0 0.0
      %207 = vmatpush1.msra.mxu0 0.0
      %208 = vmatprep.subr.mxu0 0.0
      %209 = vmatpush1.msra.mxu0 0.0
      %210 = vmatprep.subr.mxu0 0.0
      %211 = vmatpush1.msra.mxu0 0.0
      %212 = vmatprep.subr.mxu0 0.0
      %213 = vmatpush1.msra.mxu0 0.0
      %214 = vmatprep.subr.mxu0 0.0
      %215 = vmatpush1.msra.mxu0 0.0
      %216 = vmatprep.subr.mxu0 0.0
      %217 = vmatpush1.msra.mxu0 0.0
      %218 = vmatprep.subr.mxu0 0.0
      %219 = vmatpush1.msra.mxu0 0.0
      %220 = vmatprep.subr.mxu0 0.0
      %221 = vmatpush1.msra.mxu0 0.0
      %222 = vmatprep.subr.mxu0 0.0
      %223 = vmatpush1.msra.mxu0 0.0
      %224 = vmatprep.subr.mxu0 0.0
      %225 = vmatpush1.msra.mxu0 0.0
      %226 = vmatprep.subr.mxu0 0.0
      %227 = vmatpush1.msra.mxu0 0.0
      %228 = vmatprep.subr.mxu0 0.0
      %229 = vmatpush1.msra.mxu0 0.0
      %230 = vmatprep.subr.mxu0 0.0
      %231 = vmatpush1.msra.mxu0 0.0
      %232 = vmatprep.subr.mxu0 0.0
      %233 = vmatpush1.msra.mxu0 0.0
      %234 = vmatprep.subr.mxu0 0.0
      %235 = vmatpush1.msra.mxu0 0.0
      %236 = vmatprep.subr.mxu0 0.0
      %237 = vmatpush1.msra.mxu0 0.0
      %238 = vmatprep.subr.mxu0 0.0
      %239 = vmatpush1.msra.mxu0 0.0
      %240 = vmatprep.subr.mxu0 0.0
      %241 = vmatpush1.msra.mxu0 0.0
      %242 = vmatprep.subr.mxu0 0.0
      %243 = vmatpush1.msra.mxu0 0.0
      %244 = vmatprep.subr.mxu0 0.0
      %245 = vmatpush1.msra.mxu0 0.0
      %246 = vmatprep.mubr.f32.mxu0 0.0
      %247 = vmatmul.mubr.f32.gmra.mrb[0].mxu0 %v180
      %v248 = vpop.f32.mrb[0].mxu0
      %v249 = vadd.f32 %v176, %v248
      %v250 = vpop.f32.mrb[0].mxu0
      %251 = vdwg.mxu0
      %vm252 = vcmask 261120
      %253 = vst.msk [vmem:[%s168] sm:$0xff] %vm252, %v249
      %p254 = scmp.lt.s32.totalorder %s14, 1
      %s255 = scalar_select %p254, %s14, 1
      %s256 = smul.addr %s255, 8
      %s257 = scalar_lea.vmem %s3, %s256
      // Predicated region
      $region33: #{_forward_impl.4} parent=31 // pred_check
        %p258 = pneg %p100
      $region34: #{_forward_impl.4} parent=31 // pred_check_branch
        %260 = sbr.rel (%p258) target = $region36
      $region35: #{_forward_impl.4} parent=31 // pred_region
        _
      $region36: #{_forward_impl.4} parent=31 // pred_fallthru
        _
    $region32: #{_forward_impl.4} parent=5 // pred_fallthru
      _
    %p261 = scmp.le.s32.totalorder 2, %s9
    // Predicated region
    $region37: #{_forward_impl.4} parent=5 // pred_check
      %p262 = pneg %p261
    $region38: #{_forward_impl.4} parent=5 // pred_check_branch
      %264 = sbr.rel (%p262) target = $region40
    $region39: #{_forward_impl.4} parent=5 // pred_region
      %s265 = ssub.s32 %s9, 2
      // Predicated region
      $region41: #{_forward_impl.4} parent=39 // pred_check
        %p266 = pneg %p106
      $region42: #{_forward_impl.4} parent=39 // pred_check_branch
        %268 = sbr.rel (%p266) target = $region44
      $region43: #{_forward_impl.4} parent=39 // pred_region
        %p269 = scmp.lt.s32.totalorder %s15, 1
        %s270 = scalar_select %p269, %s15, 1
        %s271 = smul.addr %s270, 8
        %s272 = scalar_lea.vmem %s3, %s271
      $region44: #{_forward_impl.4} parent=39 // pred_fallthru
        _
    $region40: #{_forward_impl.4} parent=5 // pred_fallthru
      _
  $region6: #{_forward_impl.4} parent=0 // loop_footer
    %s13 = sadd.s32 1, %s9
  $region7: #{_forward_impl.4} parent=0 // loop_footer_branch
    %8 = sbr.rel target = $region3
  $region8: #{_forward_impl.4} parent=0 // loop_exit
    _

// kernel: _forward_impl.3
$region0: #{_forward_impl.3}
  #allocation0 [shape = 'u32[]', space=smem, size = 0x4, offset = 0x4, fixed_abs, tag = 'smem constant byte address 0x4 - core index']
  #allocation1 [shape = 'u32[144,128]{1,0:T(1,128)}', space=vmem, size = 0x12000, scoped, tag = 'internal scratch']
  %s0 = inlined_call_operand.vmem [shape: f32[3,8,4], index: 0, kind: input, shape index: {}]
  %s1 = inlined_call_operand.vmem [shape: f32[8,1], index: 1, kind: input, shape index: {}]
  %s2 = inlined_call_operand.vmem [shape: f32[2,4,80], index: 2, kind: input, shape index: {}]
  %s3 = inlined_call_operand.vmem [shape: f32[2,8,48], index: 3, kind: output, shape index: {}]
  %s4 = sld [smem:[#allocation0]]
  $region45: #{_forward_impl.3} parent=0
    _
  %s6 = ssub.s32 1, %s4
  %s7 = scalar_select 0, %s6, %s4
  loop: start=0, step=1, limit=4
  $region2: #{_forward_impl.3} parent=0 // loop_pre_header
    _
  $region3: #{_forward_impl.3} parent=0 // loop_header
    %s9 = sphi 0, %s13
    %p10 = scmp.ge.s32.totalorder %s9, 4
    %s17 = sphi 0, %s17
    %s19 = sphi 0, %s17
    %s20 = sphi 0, %s19
    %s34 = sphi 0, %s20
    %s38 = sphi 0, %s38
    %s40 = sphi 0, %s38
    %s41 = sphi 0, %s40
    %s55 = sphi 0, %s41
    %s61 = sphi 0, %s63
    %s64 = sphi 0, %s61
    %s65 = sphi 0, %s64
    %s81 = sphi 0, %s65
    %s87 = sphi 0, %s89
    %s90 = sphi 0, %s87
    %s91 = sphi 0, %s90
    %s107 = sphi 0, %s91
  $region4: #{_forward_impl.3} parent=0 // loop_header_branch
    %12 = sbr.rel (%p10) target = $region8
  $region5: #{_forward_impl.3} parent=0 // loop_body
    %s14 = ssub.s32 %s9, 1
    %s15 = ssub.s32 %s9, 2
    %s16 = sadd.s32 %s9, 1
    %s18 = sadd.s32 %s17, 1
    %p21 = scmp.eq.s32.totalorder %s9, 1
    %p22 = scmp.ne.s32.totalorder %s17, %s19
    %p23 = scmp.eq.s32.totalorder %s9, 0
    %p24 = por %p22, %p23
    %p25 = scmp.ne.s32.totalorder %s17, %s19
    %p26 = scmp.eq.s32.totalorder %s14, 1
    %p27 = por %p25, %p26
    %p28 = scmp.ne.s32.totalorder %s19, %s20
    %p29 = scmp.eq.s32.totalorder %s14, 0
    %p30 = por %p28, %p29
    %p31 = scmp.ne.s32.totalorder %s19, %s20
    %p32 = scmp.eq.s32.totalorder %s15, 1
    %p33 = por %p31, %p32
    %p35 = scmp.ne.s32.totalorder %s20, %s34
    %p36 = scmp.eq.s32.totalorder %s15, 0
    %p37 = por %p35, %p36
    %s39 = sadd.s32 %s38, 1
    %p42 = scmp.eq.s32.totalorder %s9, 1
    %p43 = scmp.ne.s32.totalorder %s38, %s40
    %p44 = scmp.eq.s32.totalorder %s9, 0
    %p45 = por %p43, %p44
    %p46 = scmp.ne.s32.totalorder %s38, %s40
    %p47 = scmp.eq.s32.totalorder %s14, 1
    %p48 = por %p46, %p47
    %p49 = scmp.ne.s32.totalorder %s40, %s41
    %p50 = scmp.eq.s32.totalorder %s14, 0
    %p51 = por %p49, %p50
    %p52 = scmp.ne.s32.totalorder %s40, %s41
    %p53 = scmp.eq.s32.totalorder %s15, 1
    %p54 = por %p52, %p53
    %p56 = scmp.ne.s32.totalorder %s41, %s55
    %p57 = scmp.eq.s32.totalorder %s15, 0
    %p58 = por %p56, %p57
    %s59 = ssub.s32 %s9, %s16
    %p60 = scmp.eq.s32.totalorder %s59, 0
    %s62 = sadd.s32 %s61, 1
    %s63 = scalar_select %p60, %s61, %s62
    %p66 = pneg %p60
    %p67 = scmp.eq.s32.totalorder %s9, 1
    %p68 = por %p66, %p67
    %p69 = scmp.ne.s32.totalorder %s61, %s64
    %p70 = scmp.eq.s32.totalorder %s9, 0
    %p71 = por %p69, %p70
    %p72 = scmp.ne.s32.totalorder %s61, %s64
    %p73 = scmp.eq.s32.totalorder %s14, 1
    %p74 = por %p72, %p73
    %p75 = scmp.ne.s32.totalorder %s64, %s65
    %p76 = scmp.eq.s32.totalorder %s14, 0
    %p77 = por %p75, %p76
    %p78 = scmp.ne.s32.totalorder %s64, %s65
    %p79 = scmp.eq.s32.totalorder %s15, 1
    %p80 = por %p78, %p79
    %p82 = scmp.ne.s32.totalorder %s65, %s81
    %p83 = scmp.eq.s32.totalorder %s15, 0
    %p84 = por %p82, %p83
    %s85 = ssub.s32 %s9, %s16
    %p86 = scmp.eq.s32.totalorder %s85, 0
    %s88 = sadd.s32 %s87, 1
    %s89 = scalar_select %p86, %s87, %s88
    %p92 = pneg %p86
    %p93 = scmp.eq.s32.totalorder %s9, 1
    %p94 = por %p92, %p93
    %p95 = scmp.ne.s32.totalorder %s87, %s90
    %p96 = scmp.eq.s32.totalorder %s9, 0
    %p97 = por %p95, %p96
    %p98 = scmp.ne.s32.totalorder %s87, %s90
    %p99 = scmp.eq.s32.totalorder %s14, 1
    %p100 = por %p98, %p99
    %p101 = scmp.ne.s32.totalorder %s90, %s91
    %p102 = scmp.eq.s32.totalorder %s14, 0
    %p103 = por %p101, %p102
    %p104 = scmp.ne.s32.totalorder %s90, %s91
    %p105 = scmp.eq.s32.totalorder %s15, 1
    %p106 = por %p104, %p105
    %p108 = scmp.ne.s32.totalorder %s91, %s107
    %p109 = scmp.eq.s32.totalorder %s15, 0
    %p110 = por %p108, %p109
    %p111 = scmp.le.s32.totalorder 1, %s9
    %p112 = scmp.lt.s32.totalorder %s9, 3
    %p113 = pnand %p111, %p112
    %p114 = pneg %p113
    // Predicated region
    $region9: #{_forward_impl.3} parent=5 // pred_check
      _
    $region10: #{_forward_impl.3} parent=5 // pred_check_branch
      %116 = sbr.rel (%p113) target = $region12
    $region11: #{_forward_impl.3} parent=5 // pred_region
      %s117 = ssub.s32 %s9, 1
      // Predicated region
      $region13: #{_forward_impl.3} parent=11 // pred_check
        %p118 = pneg %p30
      $region14: #{_forward_impl.3} parent=11 // pred_check_branch
        %120 = sbr.rel (%p118) target = $region16
      $region15: #{_forward_impl.3} parent=11 // pred_region
        _
      $region16: #{_forward_impl.3} parent=11 // pred_fallthru
        _
      // Predicated region
      $region17: #{_forward_impl.3} parent=11 // pred_check
        %p121 = pneg %p51
      $region18: #{_forward_impl.3} parent=11 // pred_check_branch
        %123 = sbr.rel (%p121) target = $region20
      $region19: #{_forward_impl.3} parent=11 // pred_region
        _
      $region20: #{_forward_impl.3} parent=11 // pred_fallthru
        _
    $region12: #{_forward_impl.3} parent=5 // pred_fallthru
      _
    %p124 = scmp.lt.s32.totalorder %s9, 2
    // Predicated region
    $region21: #{_forward_impl.3} parent=5 // pred_check
      %p125 = pneg %p124
    $region22: #{_forward_impl.3} parent=5 // pred_check_branch
      %127 = sbr.rel (%p125) target = $region24
    $region23: #{_forward_impl.3} parent=5 // pred_region
      // Predicated region
      $region25: #{_forward_impl.3} parent=23 // pred_check
        %p128 = pneg %p71
      $region26: #{_forward_impl.3} parent=23 // pred_check_branch
        %130 = sbr.rel (%p128) target = $region28
      $region27: #{_forward_impl.3} parent=23 // pred_region
        %p131 = scmp.lt.s32.totalorder %s9, 1
        %s132 = scalar_select %p131, %s9, 1
        %s133 = smul.addr %s132, 4
        %s134 = scalar_lea.vmem %s2, %s133
      $region28: #{_forward_impl.3} parent=23 // pred_fallthru
        _
    $region24: #{_forward_impl.3} parent=5 // pred_fallthru
      _
    %p135 = scmp.le.s32.totalorder 1, %s9
    %p136 = scmp.lt.s32.totalorder %s9, 3
    %p137 = pnand %p135, %p136
    %p138 = pneg %p137
    // Predicated region
    $region29: #{_forward_impl.3} parent=5 // pred_check
      _
    $region30: #{_forward_impl.3} parent=5 // pred_check_branch
      %140 = sbr.rel (%p137) target = $region32
    $region31: #{_forward_impl.3} parent=5 // pred_region
      %s141 = ssub.s32 %s9, 1
      %p142 = pneg %p30
      %p143 = pneg %p27
      %p144 = pneg %p51
      %p145 = pneg %p48
      %p146 = scmp.lt.s32.totalorder %s14, 1
      %s147 = scalar_select %p146, %s14, 1
      %s148 = smul.addr %s147, 4
      %s149 = scalar_lea.vmem %s2, %s148
      %p150 = pneg %p77
      %p151 = pneg %p74
      %p152 = pneg %p103
      %p153 = pneg %p100
      %p154 = scmp.lt.s32.totalorder %s14, 1
      %s155 = scalar_select %p154, %s14, 1
      %s156 = smul.addr %s155, 8
      %s157 = scalar_lea.vmem %s3, %s156
      %p158 = scmp.lt.s32.totalorder %s14, 1
      %s159 = scalar_select %p158, %s14, 1
      %s160 = smul.addr %s159, 4
      %s161 = scalar_lea.vmem %s2, %s160
      %p162 = scmp.lt.s32.totalorder %s14, 1
      %s163 = scalar_select %p162, %s14, 1
      %s164 = smul.addr %s163, 8
      %s165 = scalar_lea.vmem %s3, %s164
      %v166 = vld [vmem:[%s0] sm:$0xff]
      %v167 = vld [vmem:[%s161] sm:$0xf]
      %s168 = scalar_lea.vmem %s0, 8
      %v169 = vld [vmem:[%s168] sm:$0xff]
      %171 = vrot.lane.b32.xlu0 %v167, 112
      %v172 = vpop.permute.xlu0 %171
      %vm173 = vcmask 31744
      %v175 = vsel %vm173, %v169, 0
      %vm177 = vcmask 1043456
      %v178 = vsel %vm177, %v172, 0
      %180 = vmatprep.subr.mxu0 0.0
      %181 = vmatpush1.msra.mxu0 %v178
      %182 = vmatprep.subr.mxu0 0.0
      %183 = vmatpush1.msra.mxu0 0.0
      %184 = vmatprep.subr.mxu0 0.0
      %185 = vmatpush1.msra.mxu0 0.0
      %186 = vmatprep.subr.mxu0 0.0
      %187 = vmatpush1.msra.mxu0 0.0
      %188 = vmatprep.subr.mxu0 0.0
      %189 = vmatpush1.msra.mxu0 0.0
      %190 = vmatprep.subr.mxu0 0.0
      %191 = vmatpush1.msra.mxu0 0.0
      %192 = vmatprep.subr.mxu0 0.0
      %193 = vmatpush1.msra.mxu0 0.0
      %194 = vmatprep.subr.mxu0 0.0
      %195 = vmatpush1.msra.mxu0 0.0
      %196 = vmatprep.subr.mxu0 0.0
      %197 = vmatpush1.msra.mxu0 0.0
      %198 = vmatprep.subr.mxu0 0.0
      %199 = vmatpush1.msra.mxu0 0.0
      %200 = vmatprep.subr.mxu0 0.0
      %201 = vmatpush1.msra.mxu0 0.0
      %202 = vmatprep.subr.mxu0 0.0
      %203 = vmatpush1.msra.mxu0 0.0
      %204 = vmatprep.subr.mxu0 0.0
      %205 = vmatpush1.msra.mxu0 0.0
      %206 = vmatprep.subr.mxu0 0.0
      %207 = vmatpush1.msra.mxu0 0.0
      %208 = vmatprep.subr.mxu0 0.0
      %209 = vmatpush1.msra.mxu0 0.0
      %210 = vmatprep.subr.mxu0 0.0
      %211 = vmatpush1.msra.mxu0 0.0
      %212 = vmatprep.subr.mxu0 0.0
      %213 = vmatpush1.msra.mxu0 0.0
      %214 = vmatprep.subr.mxu0 0.0
      %215 = vmatpush1.msra.mxu0 0.0
      %216 = vmatprep.subr.mxu0 0.0
      %217 = vmatpush1.msra.mxu0 0.0
      %218 = vmatprep.subr.mxu0 0.0
      %219 = vmatpush1.msra.mxu0 0.0
      %220 = vmatprep.subr.mxu0 0.0
      %221 = vmatpush1.msra.mxu0 0.0
      %222 = vmatprep.subr.mxu0 0.0
      %223 = vmatpush1.msra.mxu0 0.0
      %224 = vmatprep.subr.mxu0 0.0
      %225 = vmatpush1.msra.mxu0 0.0
      %226 = vmatprep.subr.mxu0 0.0
      %227 = vmatpush1.msra.mxu0 0.0
      %228 = vmatprep.subr.mxu0 0.0
      %229 = vmatpush1.msra.mxu0 0.0
      %230 = vmatprep.subr.mxu0 0.0
      %231 = vmatpush1.msra.mxu0 0.0
      %232 = vmatprep.subr.mxu0 0.0
      %233 = vmatpush1.msra.mxu0 0.0
      %234 = vmatprep.subr.mxu0 0.0
      %235 = vmatpush1.msra.mxu0 0.0
      %236 = vmatprep.subr.mxu0 0.0
      %237 = vmatpush1.msra.mxu0 0.0
      %238 = vmatprep.subr.mxu0 0.0
      %239 = vmatpush1.msra.mxu0 0.0
      %240 = vmatprep.subr.mxu0 0.0
      %241 = vmatpush1.msra.mxu0 0.0
      %242 = vmatprep.subr.mxu0 0.0
      %243 = vmatpush1.msra.mxu0 0.0
      %244 = vmatprep.mubr.f32.mxu0 0.0
      %245 = vmatmul.mubr.f32.gmra.mrb[0].mxu0 %v175
      %v246 = vpop.f32.mrb[0].mxu0
      %v247 = vadd.f32 0.0, %v246
      %v248 = vpop.f32.mrb[0].mxu0
      %249 = vdwg.mxu0
      %v251 = vsel %vm173, %v166, 0
      %v253 = vsel %vm177, %v167, 0
      %255 = vmatprep.subr.mxu0 0.0
      %256 = vmatpush1.msra.mxu0 %v253
      %257 = vmatprep.subr.mxu0 0.0
      %258 = vmatpush1.msra.mxu0 0.0
      %259 = vmatprep.subr.mxu0 0.0
      %260 = vmatpush1.msra.mxu0 0.0
      %261 = vmatprep.subr.mxu0 0.0
      %262 = vmatpush1.msra.mxu0 0.0
      %263 = vmatprep.subr.mxu0 0.0
      %264 = vmatpush1.msra.mxu0 0.0
      %265 = vmatprep.subr.mxu0 0.0
      %266 = vmatpush1.msra.mxu0 0.0
      %267 = vmatprep.subr.mxu0 0.0
      %268 = vmatpush1.msra.mxu0 0.0
      %269 = vmatprep.subr.mxu0 0.0
      %270 = vmatpush1.msra.mxu0 0.0
      %271 = vmatprep.subr.mxu0 0.0
      %272 = vmatpush1.msra.mxu0 0.0
      %273 = vmatprep.subr.mxu0 0.0
      %274 = vmatpush1.msra.mxu0 0.0
      %275 = vmatprep.subr.mxu0 0.0
      %276 = vmatpush1.msra.mxu0 0.0
      %277 = vmatprep.subr.mxu0 0.0
      %278 = vmatpush1.msra.mxu0 0.0
      %279 = vmatprep.subr.mxu0 0.0
      %280 = vmatpush1.msra.mxu0 0.0
      %281 = vmatprep.subr.mxu0 0.0
      %282 = vmatpush1.msra.mxu0 0.0
      %283 = vmatprep.subr.mxu0 0.0
      %284 = vmatpush1.msra.mxu0 0.0
      %285 = vmatprep.subr.mxu0 0.0
      %286 = vmatpush1.msra.mxu0 0.0
      %287 = vmatprep.subr.mxu0 0.0
      %288 = vmatpush1.msra.mxu0 0.0
      %289 = vmatprep.subr.mxu0 0.0
      %290 = vmatpush1.msra.mxu0 0.0
      %291 = vmatprep.subr.mxu0 0.0
      %292 = vmatpush1.msra.mxu0 0.0
      %293 = vmatprep.subr.mxu0 0.0
      %294 = vmatpush1.msra.mxu0 0.0
      %295 = vmatprep.subr.mxu0 0.0
      %296 = vmatpush1.msra.mxu0 0.0
      %297 = vmatprep.subr.mxu0 0.0
      %298 = vmatpush1.msra.mxu0 0.0
      %299 = vmatprep.subr.mxu0 0.0
      %300 = vmatpush1.msra.mxu0 0.0
      %301 = vmatprep.subr.mxu0 0.0
      %302 = vmatpush1.msra.mxu0 0.0
      %303 = vmatprep.subr.mxu0 0.0
      %304 = vmatpush1.msra.mxu0 0.0
      %305 = vmatprep.subr.mxu0 0.0
      %306 = vmatpush1.msra.mxu0 0.0
      %307 = vmatprep.subr.mxu0 0.0
      %308 = vmatpush1.msra.mxu0 0.0
      %309 = vmatprep.subr.mxu0 0.0
      %310 = vmatpush1.msra.mxu0 0.0
      %311 = vmatprep.subr.mxu0 0.0
      %312 = vmatpush1.msra.mxu0 0.0
      %313 = vmatprep.subr.mxu0 0.0
      %314 = vmatpush1.msra.mxu0 0.0
      %315 = vmatprep.subr.mxu0 0.0
      %316 = vmatpush1.msra.mxu0 0.0
      %317 = vmatprep.subr.mxu0 0.0
      %318 = vmatpush1.msra.mxu0 0.0
      %319 = vmatprep.mubr.f32.mxu0 0.0
      %320 = vmatmul.mubr.f32.gmra.mrb[0].mxu0 %v251
      %v321 = vpop.f32.mrb[0].mxu0
      %v322 = vadd.f32 %v247, %v321
      %v323 = vpop.f32.mrb[0].mxu0
      %324 = vdwg.mxu0
      %s325 = scalar_lea.vmem %s0, 16
      %v326 = vld [vmem:[%s325] sm:$0xff]
      %327 = vrot.lane.b32.xlu0 %v167, 96
      %v328 = vpop.permute.xlu0 %327
      %v330 = vsel %vm173, %v326, 0
      %v332 = vsel %vm177, %v328, 0
      %334 = vmatprep.subr.mxu0 0.0
      %335 = vmatpush1.msra.mxu0 %v332
      %336 = vmatprep.subr.mxu0 0.0
      %337 = vmatpush1.msra.mxu0 0.0
      %338 = vmatprep.subr.mxu0 0.0
      %339 = vmatpush1.msra.mxu0 0.0
      %340 = vmatprep.subr.mxu0 0.0
      %341 = vmatpush1.msra.mxu0 0.0
      %342 = vmatprep.subr.mxu0 0.0
      %343 = vmatpush1.msra.mxu0 0.0
      %344 = vmatprep.subr.mxu0 0.0
      %345 = vmatpush1.msra.mxu0 0.0
      %346 = vmatprep.subr.mxu0 0.0
      %347 = vmatpush1.msra.mxu0 0.0
      %348 = vmatprep.subr.mxu0 0.0
      %349 = vmatpush1.msra.mxu0 0.0
      %350 = vmatprep.subr.mxu0 0.0
      %351 = vmatpush1.msra.mxu0 0.0
      %352 = vmatprep.subr.mxu0 0.0
      %353 = vmatpush1.msra.mxu0 0.0
      %354 = vmatprep.subr.mxu0 0.0
      %355 = vmatpush1.msra.mxu0 0.0
      %356 = vmatprep.subr.mxu0 0.0
      %357 = vmatpush1.msra.mxu0 0.0
      %358 = vmatprep.subr.mxu0 0.0
      %359 = vmatpush1.msra.mxu0 0.0
      %360 = vmatprep.subr.mxu0 0.0
      %361 = vmatpush1.msra.mxu0 0.0
      %362 = vmatprep.subr.mxu0 0.0
      %363 = vmatpush1.msra.mxu0 0.0
      %364 = vmatprep.subr.mxu0 0.0
      %365 = vmatpush1.msra.mxu0 0.0
      %366 = vmatprep.subr.mxu0 0.0
      %367 = vmatpush1.msra.mxu0 0.0
      %368 = vmatprep.subr.mxu0 0.0
      %369 = vmatpush1.msra.mxu0 0.0
      %370 = vmatprep.subr.mxu0 0.0
      %371 = vmatpush1.msra.mxu0 0.0
      %372 = vmatprep.subr.mxu0 0.0
      %373 = vmatpush1.msra.mxu0 0.0
      %374 = vmatprep.subr.mxu0 0.0
      %375 = vmatpush1.msra.mxu0 0.0
      %376 = vmatprep.subr.mxu0 0.0
      %377 = vmatpush1.msra.mxu0 0.0
      %378 = vmatprep.subr.mxu0 0.0
      %379 = vmatpush1.msra.mxu0 0.0
      %380 = vmatprep.subr.mxu0 0.0
      %381 = vmatpush1.msra.mxu0 0.0
      %382 = vmatprep.subr.mxu0 0.0
      %383 = vmatpush1.msra.mxu0 0.0
      %384 = vmatprep.subr.mxu0 0.0
      %385 = vmatpush1.msra.mxu0 0.0
      %386 = vmatprep.subr.mxu0 0.0
      %387 = vmatpush1.msra.mxu0 0.0
      %388 = vmatprep.subr.mxu0 0.0
      %389 = vmatpush1.msra.mxu0 0.0
      %390 = vmatprep.subr.mxu0 0.0
      %391 = vmatpush1.msra.mxu0 0.0
      %392 = vmatprep.subr.mxu0 0.0
      %393 = vmatpush1.msra.mxu0 0.0
      %394 = vmatprep.subr.mxu0 0.0
      %395 = vmatpush1.msra.mxu0 0.0
      %396 = vmatprep.subr.mxu0 0.0
      %397 = vmatpush1.msra.mxu0 0.0
      %398 = vmatprep.mubr.f32.mxu0 0.0
      %399 = vmatmul.mubr.f32.gmra.mrb[0].mxu0 %v330
      %v400 = vpop.f32.mrb[0].mxu0
      %v401 = vadd.f32 0.0, %v400
      %v402 = vpop.f32.mrb[0].mxu0
      %403 = vdwg.mxu0
      %v404 = vadd.f32 %v322, %v401
      %v405 = vld [vmem:[%s1] sm:$0xff]
      %407 = vset.pattern.permute.xlu0 0
      %408 = vperm.xlu0 %407, %v405
      %v409 = vpop.permute.xlu0 %408
      %v411 = vadd.f32 %v404, %v409
      %vm412 = vcmask 392192
      %413 = vst.msk [vmem:[%s165] sm:$0xff] %vm412, %v411
      %p414 = scmp.lt.s32.totalorder %s14, 1
      %s415 = scalar_select %p414, %s14, 1
      %s416 = smul.addr %s415, 8
      %s417 = scalar_lea.vmem %s3, %s416
      // Predicated region
      $region33: #{_forward_impl.3} parent=31 // pred_check
        %p418 = pneg %p100
      $region34: #{_forward_impl.3} parent=31 // pred_check_branch
        %420 = sbr.rel (%p418) target = $region36
      $region35: #{_forward_impl.3} parent=31 // pred_region
        _
      $region36: #{_forward_impl.3} parent=31 // pred_fallthru
        _
    $region32: #{_forward_impl.3} parent=5 // pred_fallthru
      _
    %p421 = scmp.le.s32.totalorder 2, %s9
    // Predicated region
    $region37: #{_forward_impl.3} parent=5 // pred_check
      %p422 = pneg %p421
    $region38: #{_forward_impl.3} parent=5 // pred_check_branch
      %424 = sbr.rel (%p422) target = $region40
    $region39: #{_forward_impl.3} parent=5 // pred_region
      %s425 = ssub.s32 %s9, 2
      // Predicated region
      $region41: #{_forward_impl.3} parent=39 // pred_check
        %p426 = pneg %p106
      $region42: #{_forward_impl.3} parent=39 // pred_check_branch
        %428 = sbr.rel (%p426) target = $region44
      $region43: #{_forward_impl.3} parent=39 // pred_region
        %p429 = scmp.lt.s32.totalorder %s15, 1
        %s430 = scalar_select %p429, %s15, 1
        %s431 = smul.addr %s430, 8
        %s432 = scalar_lea.vmem %s3, %s431
      $region44: #{_forward_impl.3} parent=39 // pred_fallthru
        _
    $region40: #{_forward_impl.3} parent=5 // pred_fallthru
      _
  $region6: #{_forward_impl.3} parent=0 // loop_footer
    %s13 = sadd.s32 1, %s9
  $region7: #{_forward_impl.3} parent=0 // loop_footer_branch
    %8 = sbr.rel target = $region3
  $region8: #{_forward_impl.3} parent=0 // loop_exit
    _

</llo_original>
